<compile_context>
chip_gen: v6e
topology: v6e:2x2x1
jax: 0.10.0
libtpu: 0.0.40
codegen_flags: <defaults>
</compile_context>

<pallas_src>
import jax
import jax.numpy as jnp
from jax.experimental import pallas as pl
from jax.experimental.pallas import tpu as pltpu


HALO = 8  # sublane-aligned context rows carried per tile (>= K-1 = 4)


def _round_up(a: int, b: int) -> int:
    return (a + b - 1) // b * b


def _pick_seq_tile(Cin: int, Cout: int, K: int, itemsize: int, cap: int) -> int:
    # Keep the per-step (double-buffered) working set under ~12 MiB so the
    # kernel fits the default scoped-VMEM limit on v5e (16 MiB) and leaves
    # ample headroom on v6e / v7x (32 MiB scoped, 64 MiB physical on v7x).
    budget = 12 << 20
    fixed = (2 * K * Cin * Cout * itemsize      # weight, double-buffered
             + 2 * Cout * 4                     # bias (f32)
             + 2 * HALO * Cin * itemsize)       # context block
    per_row = ((2 + 1) * Cin * itemsize         # input tile x2 + halo scratch
               + 2 * Cout * itemsize            # output tile x2
               + Cout * 4)                      # f32 accumulator
    tm = max(8, min(cap, (budget - fixed) // per_row))
    return int(tm) // 8 * 8


def _causal_conv_sigmoid_kernel(ctx_ref, x_ref, w_ref, b_ref, o_ref, buf):
    # ctx_ref: (HALO, Cin)      last 8 rows of the previous seq tile
    # x_ref:   (tm, Cin)        current seq tile
    # w_ref:   (K, Cin, Cout)   tap-major weight
    # b_ref:   (1, Cout)        f32 bias
    # o_ref:   (tm, Cout)       output tile (native Cout, masked vst if <128)
    # buf:     (tm + HALO, Cin) VMEM halo scratch
    K = w_ref.shape[0]
    Cin = x_ref.shape[1]
    tm = o_ref.shape[0]
    t = pl.program_id(1)

    # Causal left context: zeros for the first tile, otherwise the last 8 rows
    # of the previous tile (fetched straight from HBM, no wrapper copy).
    @pl.when(t == 0)
    def _():
        buf[pl.ds(0, HALO), :] = jnp.zeros((HALO, Cin), dtype=buf.dtype)

    @pl.when(t > 0)
    def _():
        buf[pl.ds(0, HALO), :] = ctx_ref[...]

    buf[pl.ds(HALO, tm), :] = x_ref[...]

    # Causal conv as K shifted matmuls, accumulated in f32 on the MXU.
    # Output row r uses buf rows [HALO - (K-1) + r .. HALO + r].
    acc = jnp.dot(buf[pl.ds(HALO - (K - 1), tm), :], w_ref[0],
                  preferred_element_type=jnp.float32)
    for k in range(1, K):
        acc = acc + jnp.dot(buf[pl.ds(HALO - (K - 1) + k, tm), :], w_ref[k],
                            preferred_element_type=jnp.float32)

    y = acc + b_ref[...].astype(jnp.float32)
    # Exact sigmoid in f32 (kernel is HBM-bound; the extra VPU/EUP work is free).
    o_ref[...] = (1.0 / (1.0 + jnp.exp(-y))).astype(o_ref.dtype)


def causal_conv1d_sigmoid(x, weight, bias, *, seq_tile: int = 1024):
    """Forward of the PyTorch `Conv` module.

    x:      (batch, seq, in_ch)
    weight: (out_ch, in_ch, K)   -- nn.Conv1d layout, K = 5
    bias:   (out_ch,)
    returns (sigmoid(causal_conv1d(x)), None), shape (batch, seq, out_ch)
    """
    B, S, Cin = x.shape
    Cout, Cin_w, K = weight.shape
    assert Cin_w == Cin
    assert K - 1 <= HALO

    itemsize = jnp.dtype(x.dtype).itemsize
    tm = _pick_seq_tile(Cin, Cout, K, itemsize, seq_tile)
    if B == 1 and S > 8:
        # v7x megacore: keep at least 2 grid blocks so one TC is never idle.
        tm = min(tm, max(8, _round_up(S, 16) // 2))
    if S <= tm:
        tm, S_pad = S, S                       # whole sequence, no tail pad
    else:
        S_pad = _round_up(S, tm)
    n_t = S_pad // tm

    # Tail pad only when the sequence is not a multiple of the tile.
    x_p = x if S_pad == S else jnp.pad(x, ((0, 0), (0, S_pad - S), (0, 0)))

    # Tap-major weight (K, Cin, Cout) in the activation dtype (bf16 MXU fast
    # path when x is bf16); bias kept in f32 for the accumulator epilogue.
    w3 = jnp.transpose(weight, (2, 1, 0)).astype(x.dtype)
    b2 = bias.reshape(1, Cout).astype(jnp.float32)

    ctx_blocks_per_tile = tm // 8

    def ctx_map(b, t):
        # 8 rows immediately preceding this tile (block units of 8 rows);
        # clamped to block 0 at t == 0 and overwritten with zeros in-kernel.
        return (b, jnp.maximum(t * ctx_blocks_per_tile - 1, 0), 0)

    out = pl.pallas_call(
        _causal_conv_sigmoid_kernel,
        out_shape=jax.ShapeDtypeStruct((B, S_pad, Cout), x.dtype),
        grid_spec=pltpu.PrefetchScalarGridSpec(
            num_scalar_prefetch=0,
            grid=(B, n_t),
            in_specs=[
                pl.BlockSpec((None, HALO, Cin), ctx_map),
                pl.BlockSpec((None, tm, Cin), lambda b, t: (b, t, 0)),
                pl.BlockSpec((K, Cin, Cout), lambda b, t: (0, 0, 0)),
                pl.BlockSpec((1, Cout), lambda b, t: (0, 0)),
            ],
            out_specs=pl.BlockSpec((None, tm, Cout), lambda b, t: (b, t, 0)),
            scratch_shapes=[pltpu.VMEM((tm + HALO, Cin), x.dtype)],
        ),
        compiler_params=pltpu.CompilerParams(
            dimension_semantics=("parallel", "parallel")),
    )(x_p, x_p, w3, b2)

    if S_pad != S:
        out = out[:, :S, :]
    return out, None


if __name__ == "__main__":
    key = jax.random.PRNGKey(0)
    kx, kw, kb = jax.random.split(key, 3)

    batch, seq, in_ch, out_ch, K = 2, 8, 32, 32, 5

    x = jax.random.normal(kx, (batch, seq, in_ch), dtype=jnp.float32)
    # nn.Conv1d default init: uniform(-1/sqrt(Cin*K), 1/sqrt(Cin*K))
    bound = 1.0 / ((in_ch * K) ** 0.5)
    weight = jax.random.uniform(kw, (out_ch, in_ch, K), dtype=jnp.float32,
                                minval=-bound, maxval=bound)
    bias = jax.random.uniform(kb, (out_ch,), dtype=jnp.float32,
                              minval=-bound, maxval=bound)

    y, none_out = causal_conv1d_sigmoid(x, weight, bias)
    jax.block_until_ready(y)

    # Plain-JAX reference of the PyTorch forward (causal pad + Conv1d + sigmoid).
    x_lp = jnp.pad(x, ((0, 0), (K - 1, 0), (0, 0)))
    y_ref = jnp.zeros((batch, seq, out_ch), jnp.float32) + bias[None, None, :]
    for k in range(K):
        y_ref = y_ref + jnp.einsum("bsc,oc->bso",
                                   x_lp[:, k:k + seq, :], weight[:, :, k])
    y_ref = jax.nn.sigmoid(y_ref)

    assert none_out is None
    assert y.shape == (batch, seq, out_ch)
    assert jnp.allclose(y, y_ref.astype(y.dtype), atol=1e-5, rtol=1e-5)

    print("KERNEL_OK")
</pallas_src>

<mosaic_0001>
module attributes {stable_mosaic.version = 11 : i64} {
  func.func @_causal_conv_sigmoid_kernel(%arg0: i32, %arg1: i32, %arg2: memref<1x8x32xf32, #tpu.memory_space<vmem>>, %arg3: memref<1x8x32xf32, #tpu.memory_space<vmem>>, %arg4: memref<5x32x32xf32, #tpu.memory_space<vmem>>, %arg5: memref<1x32xf32, #tpu.memory_space<vmem>>, %arg6: memref<1x8x32xf32, #tpu.memory_space<vmem>>, %arg7: memref<16x32xf32, #tpu.memory_space<vmem>>) attributes {dimension_semantics = [#tpu.dimension_semantics<parallel>, #tpu.dimension_semantics<parallel>], iteration_bounds = array<i64: 2, 1>, scalar_prefetch = 0 : i64, scratch_operands = 1 : i64, tpu.core_type = #tpu.core_type<tc>, window_params = [{transform_indices = @transform_0, window_bounds = array<i64: 1, 8, 32>}, {transform_indices = @transform_1, window_bounds = array<i64: 1, 8, 32>}, {pipeline_mode = #tpu.pipeline_mode<synchronous>, transform_indices = @transform_2, window_bounds = array<i64: 5, 32, 32>}, {pipeline_mode = #tpu.pipeline_mode<synchronous>, transform_indices = @transform_3, window_bounds = array<i64: 1, 32>}, {transform_indices = @transform_4, window_bounds = array<i64: 1, 8, 32>}]} {
    %c0_i32 = arith.constant 0 : i32
    %0 = arith.cmpi eq, %arg1, %c0_i32 : i32
    %1 = arith.extui %0 : i1 to i32
    %c0_i32_0 = arith.constant 0 : i32
    %2 = arith.cmpi ne, %1, %c0_i32_0 : i32
    scf.if %2 {
      %cst_36 = arith.constant 0.000000e+00 : f32
      %46 = vector.broadcast %cst_36 : f32 to vector<8x32xf32>
      %c0_37 = arith.constant 0 : index
      %c0_38 = arith.constant 0 : index
      %47 = vector.load %arg7[%c0_37, %c0_38] : memref<16x32xf32, #tpu.memory_space<vmem>>, vector<8x32xf32>
      tpu.vector_store %arg7[%c0_37, %c0_38], %46 {strides = array<i32>} : memref<16x32xf32, #tpu.memory_space<vmem>>, vector<8x32xf32>,
    } else {
    }
    %c0_i32_1 = arith.constant 0 : i32
    %3 = arith.cmpi sgt, %arg1, %c0_i32_1 : i32
    %4 = arith.extui %3 : i1 to i32
    %c0_i32_2 = arith.constant 0 : i32
    %5 = arith.cmpi ne, %4, %c0_i32_2 : i32
    scf.if %5 {
      %c0_36 = arith.constant 0 : index
      %c0_37 = arith.constant 0 : index
      %c0_38 = arith.constant 0 : index
      %46 = vector.load %arg2[%c0_36, %c0_37, %c0_38] : memref<1x8x32xf32, #tpu.memory_space<vmem>>, vector<1x8x32xf32>
      %47 = vector.shape_cast %46 : vector<1x8x32xf32> to vector<8x32xf32>
      %c0_39 = arith.constant 0 : index
      %c0_40 = arith.constant 0 : index
      %48 = vector.load %arg7[%c0_39, %c0_40] : memref<16x32xf32, #tpu.memory_space<vmem>>, vector<8x32xf32>
      tpu.vector_store %arg7[%c0_39, %c0_40], %47 {strides = array<i32>} : memref<16x32xf32, #tpu.memory_space<vmem>>, vector<8x32xf32>,
    } else {
    }
    %c0 = arith.constant 0 : index
    %c0_3 = arith.constant 0 : index
    %c0_4 = arith.constant 0 : index
    %6 = vector.load %arg3[%c0, %c0_3, %c0_4] : memref<1x8x32xf32, #tpu.memory_space<vmem>>, vector<1x8x32xf32>
    %7 = vector.shape_cast %6 : vector<1x8x32xf32> to vector<8x32xf32>
    %c8 = arith.constant 8 : index
    %c0_5 = arith.constant 0 : index
    %8 = vector.load %arg7[%c8, %c0_5] : memref<16x32xf32, #tpu.memory_space<vmem>>, vector<8x32xf32>
    tpu.vector_store %arg7[%c8, %c0_5], %7 {strides = array<i32>} : memref<16x32xf32, #tpu.memory_space<vmem>>, vector<8x32xf32>,
    %c4 = arith.constant 4 : index
    %c0_6 = arith.constant 0 : index
    %9 = vector.load %arg7[%c4, %c0_6] : memref<16x32xf32, #tpu.memory_space<vmem>>, vector<8x32xf32>
    %c0_7 = arith.constant 0 : index
    %c0_8 = arith.constant 0 : index
    %c0_9 = arith.constant 0 : index
    %10 = vector.load %arg4[%c0_7, %c0_8, %c0_9] : memref<5x32x32xf32, #tpu.memory_space<vmem>>, vector<1x32x32xf32>
    %11 = vector.shape_cast %10 : vector<1x32x32xf32> to vector<32x32xf32>
    %cst = arith.constant dense<0.000000e+00> : vector<8x32xf32>
    %12 = tpu.matmul %9, %11, %cst {dimension_numbers = #tpu.dot_dimension_numbers<[1], [0], [0], [1], [0, 0, 1, 1], [], []>} : vector<8x32xf32>, vector<32x32xf32>, vector<8x32xf32> -> vector<8x32xf32>
    %c5 = arith.constant 5 : index
    %c0_10 = arith.constant 0 : index
    %13 = vector.load %arg7[%c5, %c0_10] : memref<16x32xf32, #tpu.memory_space<vmem>>, vector<8x32xf32>
    %c1 = arith.constant 1 : index
    %c0_11 = arith.constant 0 : index
    %c0_12 = arith.constant 0 : index
    %14 = vector.load %arg4[%c1, %c0_11, %c0_12] : memref<5x32x32xf32, #tpu.memory_space<vmem>>, vector<1x32x32xf32>
    %15 = vector.shape_cast %14 : vector<1x32x32xf32> to vector<32x32xf32>
    %cst_13 = arith.constant dense<0.000000e+00> : vector<8x32xf32>
    %16 = tpu.matmul %13, %15, %cst_13 {dimension_numbers = #tpu.dot_dimension_numbers<[1], [0], [0], [1], [0, 0, 1, 1], [], []>} : vector<8x32xf32>, vector<32x32xf32>, vector<8x32xf32> -> vector<8x32xf32>
    %17 = arith.addf %12, %16 : vector<8x32xf32>
    %c6 = arith.constant 6 : index
    %c0_14 = arith.constant 0 : index
    %18 = vector.load %arg7[%c6, %c0_14] : memref<16x32xf32, #tpu.memory_space<vmem>>, vector<8x32xf32>
    %c2 = arith.constant 2 : index
    %c0_15 = arith.constant 0 : index
    %c0_16 = arith.constant 0 : index
    %19 = vector.load %arg4[%c2, %c0_15, %c0_16] : memref<5x32x32xf32, #tpu.memory_space<vmem>>, vector<1x32x32xf32>
    %20 = vector.shape_cast %19 : vector<1x32x32xf32> to vector<32x32xf32>
    %cst_17 = arith.constant dense<0.000000e+00> : vector<8x32xf32>
    %21 = tpu.matmul %18, %20, %cst_17 {dimension_numbers = #tpu.dot_dimension_numbers<[1], [0], [0], [1], [0, 0, 1, 1], [], []>} : vector<8x32xf32>, vector<32x32xf32>, vector<8x32xf32> -> vector<8x32xf32>
    %22 = arith.addf %17, %21 : vector<8x32xf32>
    %c7 = arith.constant 7 : index
    %c0_18 = arith.constant 0 : index
    %23 = vector.load %arg7[%c7, %c0_18] : memref<16x32xf32, #tpu.memory_space<vmem>>, vector<8x32xf32>
    %c3 = arith.constant 3 : index
    %c0_19 = arith.constant 0 : index
    %c0_20 = arith.constant 0 : index
    %24 = vector.load %arg4[%c3, %c0_19, %c0_20] : memref<5x32x32xf32, #tpu.memory_space<vmem>>, vector<1x32x32xf32>
    %25 = vector.shape_cast %24 : vector<1x32x32xf32> to vector<32x32xf32>
    %cst_21 = arith.constant dense<0.000000e+00> : vector<8x32xf32>
    %26 = tpu.matmul %23, %25, %cst_21 {dimension_numbers = #tpu.dot_dimension_numbers<[1], [0], [0], [1], [0, 0, 1, 1], [], []>} : vector<8x32xf32>, vector<32x32xf32>, vector<8x32xf32> -> vector<8x32xf32>
    %27 = arith.addf %22, %26 : vector<8x32xf32>
    %c8_22 = arith.constant 8 : index
    %c0_23 = arith.constant 0 : index
    %28 = vector.load %arg7[%c8_22, %c0_23] : memref<16x32xf32, #tpu.memory_space<vmem>>, vector<8x32xf32>
    %c4_24 = arith.constant 4 : index
    %c0_25 = arith.constant 0 : index
    %c0_26 = arith.constant 0 : index
    %29 = vector.load %arg4[%c4_24, %c0_25, %c0_26] : memref<5x32x32xf32, #tpu.memory_space<vmem>>, vector<1x32x32xf32>
    %30 = vector.shape_cast %29 : vector<1x32x32xf32> to vector<32x32xf32>
    %cst_27 = arith.constant dense<0.000000e+00> : vector<8x32xf32>
    %31 = tpu.matmul %28, %30, %cst_27 {dimension_numbers = #tpu.dot_dimension_numbers<[1], [0], [0], [1], [0, 0, 1, 1], [], []>} : vector<8x32xf32>, vector<32x32xf32>, vector<8x32xf32> -> vector<8x32xf32>
    %32 = arith.addf %27, %31 : vector<8x32xf32>
    %c0_28 = arith.constant 0 : index
    %c0_29 = arith.constant 0 : index
    %33 = vector.load %arg5[%c0_28, %c0_29] : memref<1x32xf32, #tpu.memory_space<vmem>>, vector<1x32xf32>
    %34 = vector.broadcast %33 : vector<1x32xf32> to vector<8x32xf32>
    %35 = arith.addf %32, %34 : vector<8x32xf32>
    %cst_30 = arith.constant 0.000000e+00 : f32
    %36 = vector.broadcast %cst_30 : f32 to vector<8x32xf32>
    %37 = arith.subf %36, %35 : vector<8x32xf32>
    %38 = math.exp %37 : vector<8x32xf32>
    %cst_31 = arith.constant 1.000000e+00 : f32
    %39 = vector.broadcast %cst_31 : f32 to vector<8x32xf32>
    %40 = arith.addf %39, %38 : vector<8x32xf32>
    %cst_32 = arith.constant 1.000000e+00 : f32
    %41 = vector.broadcast %cst_32 : f32 to vector<8x32xf32>
    %42 = arith.divf %41, %40 : vector<8x32xf32>
    %c0_33 = arith.constant 0 : index
    %c0_34 = arith.constant 0 : index
    %c0_35 = arith.constant 0 : index
    %43 = vector.load %arg6[%c0_33, %c0_34, %c0_35] : memref<1x8x32xf32, #tpu.memory_space<vmem>>, vector<1x8x32xf32>
    %44 = vector.shape_cast %43 : vector<1x8x32xf32> to vector<8x32xf32>
    %45 = vector.shape_cast %42 : vector<8x32xf32> to vector<1x8x32xf32>
    tpu.vector_store %arg6[%c0_33, %c0_34, %c0_35], %45 {strides = array<i32>} : memref<1x8x32xf32, #tpu.memory_space<vmem>>, vector<1x8x32xf32>,
    return
  }
  func.func @transform_0(%arg0: i32, %arg1: i32) -> (i32, i32, i32) {
    %c1_i32 = arith.constant 1 : i32
    %0 = arith.muli %arg1, %c1_i32 : i32
    %c1_i32_0 = arith.constant 1 : i32
    %1 = arith.subi %0, %c1_i32_0 : i32
    %c0_i32 = arith.constant 0 : i32
    %2 = arith.maxsi %1, %c0_i32 : i32
    %c0_i32_1 = arith.constant 0 : i32
    %c0_i32_2 = arith.constant 0 : i32
    return %arg0, %2, %c0_i32_1 : i32, i32, i32
  }
  func.func @transform_1(%arg0: i32, %arg1: i32) -> (i32, i32, i32) {
    %c0_i32 = arith.constant 0 : i32
    %c0_i32_0 = arith.constant 0 : i32
    return %arg0, %arg1, %c0_i32 : i32, i32, i32
  }
  func.func @transform_2(%arg0: i32, %arg1: i32) -> (i32, i32, i32) {
    %c0_i32 = arith.constant 0 : i32
    %c0_i32_0 = arith.constant 0 : i32
    %c0_i32_1 = arith.constant 0 : i32
    %c0_i32_2 = arith.constant 0 : i32
    return %c0_i32, %c0_i32_0, %c0_i32_1 : i32, i32, i32
  }
  func.func @transform_3(%arg0: i32, %arg1: i32) -> (i32, i32) {
    %c0_i32 = arith.constant 0 : i32
    %c0_i32_0 = arith.constant 0 : i32
    %c0_i32_1 = arith.constant 0 : i32
    return %c0_i32, %c0_i32_0 : i32, i32
  }
  func.func @transform_4(%arg0: i32, %arg1: i32) -> (i32, i32, i32) {
    %c0_i32 = arith.constant 0 : i32
    %c0_i32_0 = arith.constant 0 : i32
    return %arg0, %arg1, %c0_i32 : i32, i32, i32
  }
}

</mosaic_0001>

<llo_original>
// kernel: tpu_custom_call.1
$region0: #{tpu_custom_call.1}
  #allocation0 [shape = 'u32[]', space=smem, size = 0x4, offset = 0x4, fixed_abs, tag = 'smem constant byte address 0x4 - core index']
  #allocation1 [shape = 'u32[144,128]{1,0:T(1,128)}', space=vmem, size = 0x12000, scoped, tag = 'internal scratch']
  #allocation2 [shape = 'f32[16,32]{1,0:T(8,128)}', space=vmem, size = 0x2000, scoped, tag = 'scratch operand']
  %s0 = inlined_call_operand.hbm [shape: f32[2,8,32], index: 0, kind: input, shape index: {}]
  %s1 = inlined_call_operand.hbm [shape: f32[2,8,32], index: 1, kind: input, shape index: {}]
  %s2 = inlined_call_operand.hbm [shape: f32[5,32,32], index: 2, kind: input, shape index: {}]
  %s3 = inlined_call_operand.vmem [shape: f32[1,32], index: 3, kind: input, shape index: {}]
  %s4 = inlined_call_operand.hbm [shape: f32[2,8,32], index: 4, kind: output, shape index: {}]
  %s5 = sld [smem:[#allocation0]]
  $region69: #{tpu_custom_call.1} parent=0
    _
  %s7 = ssub.s32 1, %s5
  %s8 = scalar_select 0, %s7, %s5
  $region1: #{tpu_custom_call.1} parent=0
    #allocation3 [shape = 'u8[8192]{0}', space=vmem, size = 0x2000, scoped, tag = 'input window, operand 0']
    #allocation4 [shape = 's32[2]{0}', space=sflag, size = 0x8, scoped, tag = 'scoped memory for tpu_custom_call.1']
    #allocation5 [shape = 's32[2]{0}', space=sflag, size = 0x8, scoped, tag = 'scoped memory for tpu_custom_call.1']
    #allocation6 [shape = 'u8[8192]{0}', space=vmem, size = 0x2000, scoped, tag = 'input window, operand 1']
    #allocation7 [shape = 's32[2]{0}', space=sflag, size = 0x8, scoped, tag = 'scoped memory for tpu_custom_call.1']
    #allocation8 [shape = 'u8[81920]{0}', space=vmem, size = 0x14000, scoped, tag = 'input window, operand 2, single buffered']
    #allocation9 [shape = 'u8[8192]{0}', space=vmem, size = 0x2000, scoped, tag = 'output window, operand 0']
    %9 = vsyncpa [#allocation4], 0
    %s10 = scalar_lea.sflag [#allocation4], 1
    %11 = vsyncpa %s10, 0
    %12 = vsyncpa [#allocation7], 0
    %s13 = scalar_lea.sflag [#allocation7], 1
    %14 = vsyncpa %s13, 0
    %15 = vsyncpa [#allocation5], 0
    %s16 = scalar_lea.sflag [#allocation5], 1
    %17 = vsyncpa %s16, 0
    loop: start=0, step=1, limit=4
    $region2: #{tpu_custom_call.1} parent=1 // loop_pre_header
      _
    $region3: #{tpu_custom_call.1} parent=1 // loop_header
      %s19 = sphi 0, %s23
      %p20 = scmp.ge.s32.totalorder %s19, 4
      %s26 = sphi 0, %s38
      %s27 = sphi 0, %s34
      %s28 = sphi 0, %s26
      %s29 = sphi 0, %s27
      %s30 = sphi 0, %s28
      %s31 = sphi 0, %s29
      %s49 = sphi 0, %s51
      %s52 = sphi 0, %s49
      %s53 = sphi 0, %s52
      %s69 = sphi 0, %s53
      %s77 = sphi 0, %s79
      %s80 = sphi 0, %s77
      %s81 = sphi 0, %s80
      %s97 = sphi 0, %s81
      %s101 = sphi 0, %s101
      %s103 = sphi 0, %s101
      %s104 = sphi 0, %s103
      %s118 = sphi 0, %s104
      %s122 = sphi 0, %s122
      %s124 = sphi 0, %s122
      %s125 = sphi 0, %s124
      %s139 = sphi 0, %s125
      %s147 = sphi 0, %s149
      %s150 = sphi 0, %s147
      %s151 = sphi 0, %s150
      %s167 = sphi 0, %s151
    $region4: #{tpu_custom_call.1} parent=1 // loop_header_branch
      %22 = sbr.rel (%p20) target = $region8
    $region5: #{tpu_custom_call.1} parent=1 // loop_body
      %s24 = ssub.s32 %s19, 1
      %s25 = ssub.s32 %s19, 2
      %s32 = sadd.s32 1, %s27
      %p33 = scmp.ge.s32.totalorder %s32, 1
      %s34 = scalar_select %p33, 0, %s32
      %s35 = sadd.s32 1, %s26
      %s36 = scalar_select %p33, %s35, %s26
      %p37 = scmp.ge.s32.totalorder %s36, 2
      %s38 = scalar_select %p37, 0, %s36
      %s39 = ssub.s32 %s27, 1
      %p40 = scmp.gt.s32.totalorder %s39, 0
      %s41 = scalar_select %p40, %s39, 0
      %s42 = ssub.s32 %s34, 1
      %p43 = scmp.gt.s32.totalorder %s42, 0
      %s44 = scalar_select %p43, %s42, 0
      %s45 = ssub.s32 %s26, %s38
      %s46 = ssub.s32 %s41, %s44
      %s47 = sor.u32 %s45, %s46
      %p48 = scmp.eq.s32.totalorder %s47, 0
      %s50 = sadd.s32 %s49, 1
      %s51 = scalar_select %p48, %s49, %s50
      %p54 = pneg %p48
      %p55 = scmp.eq.s32.totalorder %s19, 1
      %p56 = por %p54, %p55
      %p57 = scmp.ne.s32.totalorder %s49, %s52
      %p58 = scmp.eq.s32.totalorder %s19, 0
      %p59 = por %p57, %p58
      %p60 = scmp.ne.s32.totalorder %s49, %s52
      %p61 = scmp.eq.s32.totalorder %s24, 1
      %p62 = por %p60, %p61
      %p63 = scmp.ne.s32.totalorder %s52, %s53
      %p64 = scmp.eq.s32.totalorder %s24, 0
      %p65 = por %p63, %p64
      %p66 = scmp.ne.s32.totalorder %s52, %s53
      %p67 = scmp.eq.s32.totalorder %s25, 1
      %p68 = por %p66, %p67
      %p70 = scmp.ne.s32.totalorder %s53, %s69
      %p71 = scmp.eq.s32.totalorder %s25, 0
      %p72 = por %p70, %p71
      %s73 = ssub.s32 %s26, %s38
      %s74 = ssub.s32 %s27, %s34
      %s75 = sor.u32 %s73, %s74
      %p76 = scmp.eq.s32.totalorder %s75, 0
      %s78 = sadd.s32 %s77, 1
      %s79 = scalar_select %p76, %s77, %s78
      %p82 = pneg %p76
      %p83 = scmp.eq.s32.totalorder %s19, 1
      %p84 = por %p82, %p83
      %p85 = scmp.ne.s32.totalorder %s77, %s80
      %p86 = scmp.eq.s32.totalorder %s19, 0
      %p87 = por %p85, %p86
      %p88 = scmp.ne.s32.totalorder %s77, %s80
      %p89 = scmp.eq.s32.totalorder %s24, 1
      %p90 = por %p88, %p89
      %p91 = scmp.ne.s32.totalorder %s80, %s81
      %p92 = scmp.eq.s32.totalorder %s24, 0
      %p93 = por %p91, %p92
      %p94 = scmp.ne.s32.totalorder %s80, %s81
      %p95 = scmp.eq.s32.totalorder %s25, 1
      %p96 = por %p94, %p95
      %p98 = scmp.ne.s32.totalorder %s81, %s97
      %p99 = scmp.eq.s32.totalorder %s25, 0
      %p100 = por %p98, %p99
      %s102 = sadd.s32 %s101, 1
      %p105 = scmp.eq.s32.totalorder %s19, 1
      %p106 = scmp.ne.s32.totalorder %s101, %s103
      %p107 = scmp.eq.s32.totalorder %s19, 0
      %p108 = por %p106, %p107
      %p109 = scmp.ne.s32.totalorder %s101, %s103
      %p110 = scmp.eq.s32.totalorder %s24, 1
      %p111 = por %p109, %p110
      %p112 = scmp.ne.s32.totalorder %s103, %s104
      %p113 = scmp.eq.s32.totalorder %s24, 0
      %p114 = por %p112, %p113
      %p115 = scmp.ne.s32.totalorder %s103, %s104
      %p116 = scmp.eq.s32.totalorder %s25, 1
      %p117 = por %p115, %p116
      %p119 = scmp.ne.s32.totalorder %s104, %s118
      %p120 = scmp.eq.s32.totalorder %s25, 0
      %p121 = por %p119, %p120
      %s123 = sadd.s32 %s122, 1
      %p126 = scmp.eq.s32.totalorder %s19, 1
      %p127 = scmp.ne.s32.totalorder %s122, %s124
      %p128 = scmp.eq.s32.totalorder %s19, 0
      %p129 = por %p127, %p128
      %p130 = scmp.ne.s32.totalorder %s122, %s124
      %p131 = scmp.eq.s32.totalorder %s24, 1
      %p132 = por %p130, %p131
      %p133 = scmp.ne.s32.totalorder %s124, %s125
      %p134 = scmp.eq.s32.totalorder %s24, 0
      %p135 = por %p133, %p134
      %p136 = scmp.ne.s32.totalorder %s124, %s125
      %p137 = scmp.eq.s32.totalorder %s25, 1
      %p138 = por %p136, %p137
      %p140 = scmp.ne.s32.totalorder %s125, %s139
      %p141 = scmp.eq.s32.totalorder %s25, 0
      %p142 = por %p140, %p141
      %s143 = ssub.s32 %s26, %s38
      %s144 = ssub.s32 %s27, %s34
      %s145 = sor.u32 %s143, %s144
      %p146 = scmp.eq.s32.totalorder %s145, 0
      %s148 = sadd.s32 %s147, 1
      %s149 = scalar_select %p146, %s147, %s148
      %p152 = pneg %p146
      %p153 = scmp.eq.s32.totalorder %s19, 1
      %p154 = por %p152, %p153
      %p155 = scmp.ne.s32.totalorder %s147, %s150
      %p156 = scmp.eq.s32.totalorder %s19, 0
      %p157 = por %p155, %p156
      %p158 = scmp.ne.s32.totalorder %s147, %s150
      %p159 = scmp.eq.s32.totalorder %s24, 1
      %p160 = por %p158, %p159
      %p161 = scmp.ne.s32.totalorder %s150, %s151
      %p162 = scmp.eq.s32.totalorder %s24, 0
      %p163 = por %p161, %p162
      %p164 = scmp.ne.s32.totalorder %s150, %s151
      %p165 = scmp.eq.s32.totalorder %s25, 1
      %p166 = por %p164, %p165
      %p168 = scmp.ne.s32.totalorder %s151, %s167
      %p169 = scmp.eq.s32.totalorder %s25, 0
      %p170 = por %p168, %p169
      %p171 = scmp.le.s32.totalorder 1, %s19
      %p172 = scmp.lt.s32.totalorder %s19, 3
      %p173 = pnand %p171, %p172
      %p174 = pneg %p173
      // Predicated region
      $region9: #{tpu_custom_call.1} parent=5 // pred_check
        _
      $region10: #{tpu_custom_call.1} parent=5 // pred_check_branch
        %176 = sbr.rel (%p173) target = $region12
      $region11: #{tpu_custom_call.1} parent=5 // pred_region
        %s177 = ssub.s32 %s19, 1
        // Predicated region
        $region13: #{tpu_custom_call.1} parent=11 // pred_check
          %p178 = pneg %p114
        $region14: #{tpu_custom_call.1} parent=11 // pred_check_branch
          %180 = sbr.rel (%p178) target = $region16
        $region15: #{tpu_custom_call.1} parent=11 // pred_region
          %s182 = ssub.s32 2560, 2560
          %183 = vsyncadd [#allocation7], %s182
          %s184 = sshll.u32 [#allocation8], 4
          %s185 = int_to_ptr.vmem [resolvable:$true] %s184
          %190 = dma.hbm_to_vmem [thread:$0]  %s2, 2560, %s185, [#allocation7], 128, 128, 8
        $region16: #{tpu_custom_call.1} parent=11 // pred_fallthru
          _
        // Predicated region
        $region17: #{tpu_custom_call.1} parent=11 // pred_check
          %p191 = pneg %p135
        $region18: #{tpu_custom_call.1} parent=11 // pred_check_branch
          %193 = sbr.rel (%p191) target = $region20
        $region19: #{tpu_custom_call.1} parent=11 // pred_region
          _
        $region20: #{tpu_custom_call.1} parent=11 // pred_fallthru
          _
      $region12: #{tpu_custom_call.1} parent=5 // pred_fallthru
        _
      %p194 = scmp.lt.s32.totalorder %s19, 2
      // Predicated region
      $region21: #{tpu_custom_call.1} parent=5 // pred_check
        %p195 = pneg %p194
      $region22: #{tpu_custom_call.1} parent=5 // pred_check_branch
        %197 = sbr.rel (%p195) target = $region24
      $region23: #{tpu_custom_call.1} parent=5 // pred_region
        // Predicated region
        $region25: #{tpu_custom_call.1} parent=23 // pred_check
          %p198 = pneg %p59
        $region26: #{tpu_custom_call.1} parent=23 // pred_check_branch
          %200 = sbr.rel (%p198) target = $region28
        $region27: #{tpu_custom_call.1} parent=23 // pred_region
          %s201 = sand.u32 %s49, 1
          %s202 = scalar_lea.sflag [#allocation4], %s201
          %s203 = sand.u32 %s49, 1
          %s204 = smul.addr %s203, 8
          %s205 = scalar_lea.vmem [#allocation3], %s204
          %s206 = ssub.s32 %s27, 1
          %p207 = scmp.gt.s32.totalorder %s206, 0
          %s208 = scalar_select %p207, %s206, 0
          %s210 = ssub.s32 128, 128
          %211 = vsyncadd %s202, %s210
          %s212 = sadd.s32 %s208, %s26
          %s213 = smul.addr %s212, 128
          %s214 = scalar_lea.hbm %s0, %s213
          %s216 = sshll.u32 %s205, 4
          %s217 = int_to_ptr.vmem [resolvable:$true] %s216
          %219 = dma.hbm_to_vmem [thread:$0]  %s214, 128, %s217, %s202
        $region28: #{tpu_custom_call.1} parent=23 // pred_fallthru
          _
        // Predicated region
        $region29: #{tpu_custom_call.1} parent=23 // pred_check
          %p220 = pneg %p87
        $region30: #{tpu_custom_call.1} parent=23 // pred_check_branch
          %222 = sbr.rel (%p220) target = $region32
        $region31: #{tpu_custom_call.1} parent=23 // pred_region
          %s223 = sand.u32 %s19, 1
          %s224 = scalar_lea.sflag [#allocation7], %s223
          %s225 = sand.u32 %s77, 1
          %s226 = smul.addr %s225, 8
          %s227 = scalar_lea.vmem [#allocation6], %s226
          %s229 = ssub.s32 128, 128
          %230 = vsyncadd %s224, %s229
          %s231 = sadd.s32 %s27, %s26
          %s232 = smul.addr %s231, 128
          %s233 = scalar_lea.hbm %s1, %s232
          %s235 = sshll.u32 %s227, 4
          %s236 = int_to_ptr.vmem [resolvable:$true] %s235
          %238 = dma.hbm_to_vmem [thread:$0]  %s233, 128, %s236, %s224
        $region32: #{tpu_custom_call.1} parent=23 // pred_fallthru
          _
      $region24: #{tpu_custom_call.1} parent=5 // pred_fallthru
        _
      %p239 = scmp.le.s32.totalorder 1, %s19
      %p240 = scmp.lt.s32.totalorder %s19, 3
      %p241 = pnand %p239, %p240
      %p242 = pneg %p241
      // Predicated region
      $region33: #{tpu_custom_call.1} parent=5 // pred_check
        _
      $region34: #{tpu_custom_call.1} parent=5 // pred_check_branch
        %244 = sbr.rel (%p241) target = $region36
      $region35: #{tpu_custom_call.1} parent=5 // pred_region
        %s245 = ssub.s32 %s19, 1
        %s246 = sand.u32 %s52, 1
        %s247 = scalar_lea.sflag [#allocation4], %s246
        %s248 = sand.u32 %s52, 1
        %s249 = smul.addr %s248, 8
        %s250 = scalar_lea.vmem [#allocation3], %s249
        // Predicated region
        $region37: #{tpu_custom_call.1} parent=35 // pred_check
          %p251 = pneg %p65
        $region38: #{tpu_custom_call.1} parent=35 // pred_check_branch
          %253 = sbr.rel (%p251) target = $region40
        $region39: #{tpu_custom_call.1} parent=35 // pred_region
          %254 = dma.done %s247, 128
        $region40: #{tpu_custom_call.1} parent=35 // pred_fallthru
          _
        %s255 = sand.u32 %s24, 1
        %s256 = scalar_lea.sflag [#allocation7], %s255
        %s257 = sand.u32 %s80, 1
        %s258 = smul.addr %s257, 8
        %s259 = scalar_lea.vmem [#allocation6], %s258
        // Predicated region
        $region41: #{tpu_custom_call.1} parent=35 // pred_check
          %p260 = pneg %p93
        $region42: #{tpu_custom_call.1} parent=35 // pred_check_branch
          %262 = sbr.rel (%p260) target = $region44
        $region43: #{tpu_custom_call.1} parent=35 // pred_region
          %263 = dma.done %s256, 128
        $region44: #{tpu_custom_call.1} parent=35 // pred_fallthru
          _
        // Predicated region
        $region45: #{tpu_custom_call.1} parent=35 // pred_check
          %p264 = pneg %p114
        $region46: #{tpu_custom_call.1} parent=35 // pred_check_branch
          %266 = sbr.rel (%p264) target = $region48
        $region47: #{tpu_custom_call.1} parent=35 // pred_region
          %267 = dma.done [#allocation7], 2560
        $region48: #{tpu_custom_call.1} parent=35 // pred_fallthru
          _
        %s268 = sand.u32 %s52, 1
        %s269 = scalar_lea.sflag [#allocation4], %s268
        %s270 = sand.u32 %s52, 1
        %s271 = smul.addr %s270, 8
        %s272 = scalar_lea.vmem [#allocation3], %s271
        %p273 = pneg %p65
        %p274 = pneg %p62
        %s275 = sand.u32 %s24, 1
        %s276 = scalar_lea.sflag [#allocation7], %s275
        %s277 = sand.u32 %s80, 1
        %s278 = smul.addr %s277, 8
        %s279 = scalar_lea.vmem [#allocation6], %s278
        %p280 = pneg %p93
        %p281 = pneg %p90
        %p282 = pneg %p114
        %p283 = pneg %p111
        %p284 = pneg %p135
        %p285 = pneg %p132
        %p286 = pneg %p163
        %p287 = pneg %p160
        %s288 = sand.u32 %s150, 1
        %s289 = scalar_lea.sflag [#allocation5], %s288
        %s290 = sand.u32 %s150, 1
        %s291 = smul.addr %s290, 8
        %s292 = scalar_lea.vmem [#allocation9], %s291
        %s293 = ssub.s32 %s29, 1
        %p294 = scmp.gt.s32.totalorder %s293, 0
        %s295 = scalar_select %p294, %s293, 0
        %p296 = scmp.eq.s32.totalorder %s29, 0
        // Predicated region
        $region49: #{tpu_custom_call.1} parent=35 // pred_check
          %p297 = pneg %p296
        $region50: #{tpu_custom_call.1} parent=35 // pred_check_branch
          %299 = sbr.rel (%p297) target = $region52
        $region51: #{tpu_custom_call.1} parent=35 // pred_region
          %vm300 = vcmask 261120
          %301 = vst.msk [vmem:[#allocation2] sm:$0xff] %vm300, 0.0
        $region52: #{tpu_custom_call.1} parent=35 // pred_fallthru
          _
        %p302 = scmp.gt.s32.totalorder %s29, 0
        // Predicated region
        $region53: #{tpu_custom_call.1} parent=35 // pred_check
          %p303 = pneg %p302
        $region54: #{tpu_custom_call.1} parent=35 // pred_check_branch
          %305 = sbr.rel (%p303) target = $region56
        $region55: #{tpu_custom_call.1} parent=35 // pred_region
          %v306 = vld [vmem:[%s250] sm:$0xff]
          %vm307 = vcmask 261120
          %308 = vst.msk [vmem:[#allocation2] sm:$0xff] %vm307, %v306
        $region56: #{tpu_custom_call.1} parent=35 // pred_fallthru
          _
        %v309 = vld [vmem:[%s259] sm:$0xff]
        %vm310 = vcmask 261120
        %311 = vst.msk [vmem:[#allocation2 + $0x8] sm:$0xff] %vm310, %v309
        %v312 = vld [vmem:[#allocation2 + $0x4] sm:$0xff]
        %v313 = vld [vmem:[#allocation8] sm:$0xff]
        %v314 = vld [vmem:[#allocation8 + $0x8] sm:$0xff]
        %v315 = vld [vmem:[#allocation8 + $0x10] sm:$0xff]
        %v316 = vld [vmem:[#allocation8 + $0x18] sm:$0xff]
        %v317 = vld [vmem:[#allocation2 + $0x5] sm:$0xff]
        %s318 = scalar_lea.vmem [#allocation8], 32
        %v319 = vld [vmem:[%s318] sm:$0xff]
        %v320 = vld [vmem:[%s318 + $0x8] sm:$0xff]
        %v321 = vld [vmem:[%s318 + $0x10] sm:$0xff]
        %v322 = vld [vmem:[%s318 + $0x18] sm:$0xff]
        %v324 = vsel %vm310, %v317, 0
        %326 = vmatprep.subr.mxu0 0.0
        %327 = vmatpush1.msra.mxu0 0.0
        %328 = vmatprep.subr.mxu0 0.0
        %329 = vmatpush1.msra.mxu0 0.0
        %330 = vmatprep.subr.mxu0 0.0
        %331 = vmatpush1.msra.mxu0 0.0
        %332 = vmatprep.subr.mxu0 0.0
        %333 = vmatpush1.msra.mxu0 0.0
        %334 = vmatprep.subr.mxu0 0.0
        %335 = vmatpush1.msra.mxu0 0.0
        %336 = vmatprep.subr.mxu0 0.0
        %337 = vmatpush1.msra.mxu0 0.0
        %338 = vmatprep.subr.mxu0 0.0
        %339 = vmatpush1.msra.mxu0 0.0
        %340 = vmatprep.subr.mxu0 0.0
        %341 = vmatpush1.msra.mxu0 0.0
        %342 = vmatprep.subr.mxu0 0.0
        %343 = vmatpush1.msra.mxu0 0.0
        %344 = vmatprep.subr.mxu0 0.0
        %345 = vmatpush1.msra.mxu0 0.0
        %346 = vmatprep.subr.mxu0 0.0
        %347 = vmatpush1.msra.mxu0 0.0
        %348 = vmatprep.subr.mxu0 0.0
        %349 = vmatpush1.msra.mxu0 0.0
        %350 = vmatprep.subr.mxu0 0.0
        %351 = vmatpush1.msra.mxu0 %v322
        %352 = vmatprep.subr.mxu0 0.0
        %353 = vmatpush1.msra.mxu0 %v321
        %354 = vmatprep.subr.mxu0 0.0
        %355 = vmatpush1.msra.mxu0 %v320
        %356 = vmatprep.subr.mxu0 0.0
        %357 = vmatpush1.msra.mxu0 %v319
        %358 = vmatprep.subr.mxu0 0.0
        %359 = vmatpush2.msra.mxu0 0.0
        %360 = vmatprep.subr.mxu0 0.0
        %361 = vmatpush2.msra.mxu0 0.0
        %362 = vmatprep.subr.mxu0 0.0
        %363 = vmatpush2.msra.mxu0 0.0
        %364 = vmatprep.subr.mxu0 0.0
        %365 = vmatpush2.msra.mxu0 0.0
        %366 = vmatprep.subr.mxu0 0.0
        %367 = vmatpush2.msra.mxu0 0.0
        %368 = vmatprep.subr.mxu0 0.0
        %369 = vmatpush2.msra.mxu0 0.0
        %370 = vmatprep.subr.mxu0 0.0
        %371 = vmatpush2.msra.mxu0 0.0
        %372 = vmatprep.subr.mxu0 0.0
        %373 = vmatpush2.msra.mxu0 0.0
        %374 = vmatprep.subr.mxu0 0.0
        %375 = vmatpush2.msra.mxu0 0.0
        %376 = vmatprep.subr.mxu0 0.0
        %377 = vmatpush2.msra.mxu0 0.0
        %378 = vmatprep.subr.mxu0 0.0
        %379 = vmatpush2.msra.mxu0 0.0
        %380 = vmatprep.subr.mxu0 0.0
        %381 = vmatpush2.msra.mxu0 0.0
        %382 = vmatprep.subr.mxu0 0.0
        %383 = vmatpush2.msra.mxu0 0.0
        %384 = vmatprep.subr.mxu0 0.0
        %385 = vmatpush2.msra.mxu0 0.0
        %386 = vmatprep.subr.mxu0 0.0
        %387 = vmatpush2.msra.mxu0 0.0
        %388 = vmatprep.subr.mxu0 0.0
        %389 = vmatpush2.msra.mxu0 0.0
        %390 = vmatprep.mubr.f32.mxu0 0.0
        %391 = vmatmul.mubr.f32.gmra.mxu0 %v324
        %v392 = vpop.f32.mrf.mxu0
        %v393 = vadd.f32 0.0, %v392
        %v394 = vpop.f32.mrf.mxu0
        %395 = vdwg.mxu0
        %v397 = vsel %vm310, %v312, 0
        %399 = vmatprep.subr.mxu0 0.0
        %400 = vmatpush1.msra.mxu0 0.0
        %401 = vmatprep.subr.mxu0 0.0
        %402 = vmatpush1.msra.mxu0 0.0
        %403 = vmatprep.subr.mxu0 0.0
        %404 = vmatpush1.msra.mxu0 0.0
        %405 = vmatprep.subr.mxu0 0.0
        %406 = vmatpush1.msra.mxu0 0.0
        %407 = vmatprep.subr.mxu0 0.0
        %408 = vmatpush1.msra.mxu0 0.0
        %409 = vmatprep.subr.mxu0 0.0
        %410 = vmatpush1.msra.mxu0 0.0
        %411 = vmatprep.subr.mxu0 0.0
        %412 = vmatpush1.msra.mxu0 0.0
        %413 = vmatprep.subr.mxu0 0.0
        %414 = vmatpush1.msra.mxu0 0.0
        %415 = vmatprep.subr.mxu0 0.0
        %416 = vmatpush1.msra.mxu0 0.0
        %417 = vmatprep.subr.mxu0 0.0
        %418 = vmatpush1.msra.mxu0 0.0
        %419 = vmatprep.subr.mxu0 0.0
        %420 = vmatpush1.msra.mxu0 0.0
        %421 = vmatprep.subr.mxu0 0.0
        %422 = vmatpush1.msra.mxu0 0.0
        %423 = vmatprep.subr.mxu0 0.0
        %424 = vmatpush1.msra.mxu0 %v316
        %425 = vmatprep.subr.mxu0 0.0
        %426 = vmatpush1.msra.mxu0 %v315
        %427 = vmatprep.subr.mxu0 0.0
        %428 = vmatpush1.msra.mxu0 %v314
        %429 = vmatprep.subr.mxu0 0.0
        %430 = vmatpush1.msra.mxu0 %v313
        %431 = vmatprep.subr.mxu0 0.0
        %432 = vmatpush2.msra.mxu0 0.0
        %433 = vmatprep.subr.mxu0 0.0
        %434 = vmatpush2.msra.mxu0 0.0
        %435 = vmatprep.subr.mxu0 0.0
        %436 = vmatpush2.msra.mxu0 0.0
        %437 = vmatprep.subr.mxu0 0.0
        %438 = vmatpush2.msra.mxu0 0.0
        %439 = vmatprep.subr.mxu0 0.0
        %440 = vmatpush2.msra.mxu0 0.0
        %441 = vmatprep.subr.mxu0 0.0
        %442 = vmatpush2.msra.mxu0 0.0
        %443 = vmatprep.subr.mxu0 0.0
        %444 = vmatpush2.msra.mxu0 0.0
        %445 = vmatprep.subr.mxu0 0.0
        %446 = vmatpush2.msra.mxu0 0.0
        %447 = vmatprep.subr.mxu0 0.0
        %448 = vmatpush2.msra.mxu0 0.0
        %449 = vmatprep.subr.mxu0 0.0
        %450 = vmatpush2.msra.mxu0 0.0
        %451 = vmatprep.subr.mxu0 0.0
        %452 = vmatpush2.msra.mxu0 0.0
        %453 = vmatprep.subr.mxu0 0.0
        %454 = vmatpush2.msra.mxu0 0.0
        %455 = vmatprep.subr.mxu0 0.0
        %456 = vmatpush2.msra.mxu0 0.0
        %457 = vmatprep.subr.mxu0 0.0
        %458 = vmatpush2.msra.mxu0 0.0
        %459 = vmatprep.subr.mxu0 0.0
        %460 = vmatpush2.msra.mxu0 0.0
        %461 = vmatprep.subr.mxu0 0.0
        %462 = vmatpush2.msra.mxu0 0.0
        %463 = vmatprep.mubr.f32.mxu0 0.0
        %464 = vmatmul.mubr.f32.gmra.mxu0 %v397
        %v465 = vpop.f32.mrf.mxu0
        %v466 = vadd.f32 %v393, %v465
        %v467 = vpop.f32.mrf.mxu0
        %468 = vdwg.mxu0
        %v469 = vld [vmem:[#allocation2 + $0x6] sm:$0xff]
        %s470 = scalar_lea.vmem [#allocation8], 64
        %v471 = vld [vmem:[%s470] sm:$0xff]
        %v472 = vld [vmem:[%s470 + $0x8] sm:$0xff]
        %v473 = vld [vmem:[%s470 + $0x10] sm:$0xff]
        %v474 = vld [vmem:[%s470 + $0x18] sm:$0xff]
        %v476 = vsel %vm310, %v469, 0
        %478 = vmatprep.subr.mxu0 0.0
        %479 = vmatpush1.msra.mxu0 0.0
        %480 = vmatprep.subr.mxu0 0.0
        %481 = vmatpush1.msra.mxu0 0.0
        %482 = vmatprep.subr.mxu0 0.0
        %483 = vmatpush1.msra.mxu0 0.0
        %484 = vmatprep.subr.mxu0 0.0
        %485 = vmatpush1.msra.mxu0 0.0
        %486 = vmatprep.subr.mxu0 0.0
        %487 = vmatpush1.msra.mxu0 0.0
        %488 = vmatprep.subr.mxu0 0.0
        %489 = vmatpush1.msra.mxu0 0.0
        %490 = vmatprep.subr.mxu0 0.0
        %491 = vmatpush1.msra.mxu0 0.0
        %492 = vmatprep.subr.mxu0 0.0
        %493 = vmatpush1.msra.mxu0 0.0
        %494 = vmatprep.subr.mxu0 0.0
        %495 = vmatpush1.msra.mxu0 0.0
        %496 = vmatprep.subr.mxu0 0.0
        %497 = vmatpush1.msra.mxu0 0.0
        %498 = vmatprep.subr.mxu0 0.0
        %499 = vmatpush1.msra.mxu0 0.0
        %500 = vmatprep.subr.mxu0 0.0
        %501 = vmatpush1.msra.mxu0 0.0
        %502 = vmatprep.subr.mxu0 0.0
        %503 = vmatpush1.msra.mxu0 %v474
        %504 = vmatprep.subr.mxu0 0.0
        %505 = vmatpush1.msra.mxu0 %v473
        %506 = vmatprep.subr.mxu0 0.0
        %507 = vmatpush1.msra.mxu0 %v472
        %508 = vmatprep.subr.mxu0 0.0
        %509 = vmatpush1.msra.mxu0 %v471
        %510 = vmatprep.subr.mxu0 0.0
        %511 = vmatpush2.msra.mxu0 0.0
        %512 = vmatprep.subr.mxu0 0.0
        %513 = vmatpush2.msra.mxu0 0.0
        %514 = vmatprep.subr.mxu0 0.0
        %515 = vmatpush2.msra.mxu0 0.0
        %516 = vmatprep.subr.mxu0 0.0
        %517 = vmatpush2.msra.mxu0 0.0
        %518 = vmatprep.subr.mxu0 0.0
        %519 = vmatpush2.msra.mxu0 0.0
        %520 = vmatprep.subr.mxu0 0.0
        %521 = vmatpush2.msra.mxu0 0.0
        %522 = vmatprep.subr.mxu0 0.0
        %523 = vmatpush2.msra.mxu0 0.0
        %524 = vmatprep.subr.mxu0 0.0
        %525 = vmatpush2.msra.mxu0 0.0
        %526 = vmatprep.subr.mxu0 0.0
        %527 = vmatpush2.msra.mxu0 0.0
        %528 = vmatprep.subr.mxu0 0.0
        %529 = vmatpush2.msra.mxu0 0.0
        %530 = vmatprep.subr.mxu0 0.0
        %531 = vmatpush2.msra.mxu0 0.0
        %532 = vmatprep.subr.mxu0 0.0
        %533 = vmatpush2.msra.mxu0 0.0
        %534 = vmatprep.subr.mxu0 0.0
        %535 = vmatpush2.msra.mxu0 0.0
        %536 = vmatprep.subr.mxu0 0.0
        %537 = vmatpush2.msra.mxu0 0.0
        %538 = vmatprep.subr.mxu0 0.0
        %539 = vmatpush2.msra.mxu0 0.0
        %540 = vmatprep.subr.mxu0 0.0
        %541 = vmatpush2.msra.mxu0 0.0
        %542 = vmatprep.mubr.f32.mxu0 0.0
        %543 = vmatmul.mubr.f32.gmra.mxu0 %v476
        %v544 = vpop.f32.mrf.mxu0
        %v545 = vadd.f32 0.0, %v544
        %v546 = vpop.f32.mrf.mxu0
        %547 = vdwg.mxu0
        %v548 = vadd.f32 %v466, %v545
        %v549 = vld [vmem:[#allocation2 + $0x7] sm:$0xff]
        %s550 = scalar_lea.vmem [#allocation8], 96
        %v551 = vld [vmem:[%s550] sm:$0xff]
        %v552 = vld [vmem:[%s550 + $0x8] sm:$0xff]
        %v553 = vld [vmem:[%s550 + $0x10] sm:$0xff]
        %v554 = vld [vmem:[%s550 + $0x18] sm:$0xff]
        %v556 = vsel %vm310, %v549, 0
        %558 = vmatprep.subr.mxu0 0.0
        %559 = vmatpush1.msra.mxu0 0.0
        %560 = vmatprep.subr.mxu0 0.0
        %561 = vmatpush1.msra.mxu0 0.0
        %562 = vmatprep.subr.mxu0 0.0
        %563 = vmatpush1.msra.mxu0 0.0
        %564 = vmatprep.subr.mxu0 0.0
        %565 = vmatpush1.msra.mxu0 0.0
        %566 = vmatprep.subr.mxu0 0.0
        %567 = vmatpush1.msra.mxu0 0.0
        %568 = vmatprep.subr.mxu0 0.0
        %569 = vmatpush1.msra.mxu0 0.0
        %570 = vmatprep.subr.mxu0 0.0
        %571 = vmatpush1.msra.mxu0 0.0
        %572 = vmatprep.subr.mxu0 0.0
        %573 = vmatpush1.msra.mxu0 0.0
        %574 = vmatprep.subr.mxu0 0.0
        %575 = vmatpush1.msra.mxu0 0.0
        %576 = vmatprep.subr.mxu0 0.0
        %577 = vmatpush1.msra.mxu0 0.0
        %578 = vmatprep.subr.mxu0 0.0
        %579 = vmatpush1.msra.mxu0 0.0
        %580 = vmatprep.subr.mxu0 0.0
        %581 = vmatpush1.msra.mxu0 0.0
        %582 = vmatprep.subr.mxu0 0.0
        %583 = vmatpush1.msra.mxu0 %v554
        %584 = vmatprep.subr.mxu0 0.0
        %585 = vmatpush1.msra.mxu0 %v553
        %586 = vmatprep.subr.mxu0 0.0
        %587 = vmatpush1.msra.mxu0 %v552
        %588 = vmatprep.subr.mxu0 0.0
        %589 = vmatpush1.msra.mxu0 %v551
        %590 = vmatprep.subr.mxu0 0.0
        %591 = vmatpush2.msra.mxu0 0.0
        %592 = vmatprep.subr.mxu0 0.0
        %593 = vmatpush2.msra.mxu0 0.0
        %594 = vmatprep.subr.mxu0 0.0
        %595 = vmatpush2.msra.mxu0 0.0
        %596 = vmatprep.subr.mxu0 0.0
        %597 = vmatpush2.msra.mxu0 0.0
        %598 = vmatprep.subr.mxu0 0.0
        %599 = vmatpush2.msra.mxu0 0.0
        %600 = vmatprep.subr.mxu0 0.0
        %601 = vmatpush2.msra.mxu0 0.0
        %602 = vmatprep.subr.mxu0 0.0
        %603 = vmatpush2.msra.mxu0 0.0
        %604 = vmatprep.subr.mxu0 0.0
        %605 = vmatpush2.msra.mxu0 0.0
        %606 = vmatprep.subr.mxu0 0.0
        %607 = vmatpush2.msra.mxu0 0.0
        %608 = vmatprep.subr.mxu0 0.0
        %609 = vmatpush2.msra.mxu0 0.0
        %610 = vmatprep.subr.mxu0 0.0
        %611 = vmatpush2.msra.mxu0 0.0
        %612 = vmatprep.subr.mxu0 0.0
        %613 = vmatpush2.msra.mxu0 0.0
        %614 = vmatprep.subr.mxu0 0.0
        %615 = vmatpush2.msra.mxu0 0.0
        %616 = vmatprep.subr.mxu0 0.0
        %617 = vmatpush2.msra.mxu0 0.0
        %618 = vmatprep.subr.mxu0 0.0
        %619 = vmatpush2.msra.mxu0 0.0
        %620 = vmatprep.subr.mxu0 0.0
        %621 = vmatpush2.msra.mxu0 0.0
        %622 = vmatprep.mubr.f32.mxu0 0.0
        %623 = vmatmul.mubr.f32.gmra.mxu0 %v556
        %v624 = vpop.f32.mrf.mxu0
        %v625 = vadd.f32 0.0, %v624
        %v626 = vpop.f32.mrf.mxu0
        %627 = vdwg.mxu0
        %v628 = vadd.f32 %v548, %v625
        %v629 = vld [vmem:[#allocation2 + $0x8] sm:$0xff]
        %s630 = scalar_lea.vmem [#allocation8], 128
        %v631 = vld [vmem:[%s630] sm:$0xff]
        %v632 = vld [vmem:[%s630 + $0x8] sm:$0xff]
        %v633 = vld [vmem:[%s630 + $0x10] sm:$0xff]
        %v634 = vld [vmem:[%s630 + $0x18] sm:$0xff]
        %v636 = vsel %vm310, %v629, 0
        %638 = vmatprep.subr.mxu0 0.0
        %639 = vmatpush1.msra.mxu0 0.0
        %640 = vmatprep.subr.mxu0 0.0
        %641 = vmatpush1.msra.mxu0 0.0
        %642 = vmatprep.subr.mxu0 0.0
        %643 = vmatpush1.msra.mxu0 0.0
        %644 = vmatprep.subr.mxu0 0.0
        %645 = vmatpush1.msra.mxu0 0.0
        %646 = vmatprep.subr.mxu0 0.0
        %647 = vmatpush1.msra.mxu0 0.0
        %648 = vmatprep.subr.mxu0 0.0
        %649 = vmatpush1.msra.mxu0 0.0
        %650 = vmatprep.subr.mxu0 0.0
        %651 = vmatpush1.msra.mxu0 0.0
        %652 = vmatprep.subr.mxu0 0.0
        %653 = vmatpush1.msra.mxu0 0.0
        %654 = vmatprep.subr.mxu0 0.0
        %655 = vmatpush1.msra.mxu0 0.0
        %656 = vmatprep.subr.mxu0 0.0
        %657 = vmatpush1.msra.mxu0 0.0
        %658 = vmatprep.subr.mxu0 0.0
        %659 = vmatpush1.msra.mxu0 0.0
        %660 = vmatprep.subr.mxu0 0.0
        %661 = vmatpush1.msra.mxu0 0.0
        %662 = vmatprep.subr.mxu0 0.0
        %663 = vmatpush1.msra.mxu0 %v634
        %664 = vmatprep.subr.mxu0 0.0
        %665 = vmatpush1.msra.mxu0 %v633
        %666 = vmatprep.subr.mxu0 0.0
        %667 = vmatpush1.msra.mxu0 %v632
        %668 = vmatprep.subr.mxu0 0.0
        %669 = vmatpush1.msra.mxu0 %v631
        %670 = vmatprep.subr.mxu0 0.0
        %671 = vmatpush2.msra.mxu0 0.0
        %672 = vmatprep.subr.mxu0 0.0
        %673 = vmatpush2.msra.mxu0 0.0
        %674 = vmatprep.subr.mxu0 0.0
        %675 = vmatpush2.msra.mxu0 0.0
        %676 = vmatprep.subr.mxu0 0.0
        %677 = vmatpush2.msra.mxu0 0.0
        %678 = vmatprep.subr.mxu0 0.0
        %679 = vmatpush2.msra.mxu0 0.0
        %680 = vmatprep.subr.mxu0 0.0
        %681 = vmatpush2.msra.mxu0 0.0
        %682 = vmatprep.subr.mxu0 0.0
        %683 = vmatpush2.msra.mxu0 0.0
        %684 = vmatprep.subr.mxu0 0.0
        %685 = vmatpush2.msra.mxu0 0.0
        %686 = vmatprep.subr.mxu0 0.0
        %687 = vmatpush2.msra.mxu0 0.0
        %688 = vmatprep.subr.mxu0 0.0
        %689 = vmatpush2.msra.mxu0 0.0
        %690 = vmatprep.subr.mxu0 0.0
        %691 = vmatpush2.msra.mxu0 0.0
        %692 = vmatprep.subr.mxu0 0.0
        %693 = vmatpush2.msra.mxu0 0.0
        %694 = vmatprep.subr.mxu0 0.0
        %695 = vmatpush2.msra.mxu0 0.0
        %696 = vmatprep.subr.mxu0 0.0
        %697 = vmatpush2.msra.mxu0 0.0
        %698 = vmatprep.subr.mxu0 0.0
        %699 = vmatpush2.msra.mxu0 0.0
        %700 = vmatprep.subr.mxu0 0.0
        %701 = vmatpush2.msra.mxu0 0.0
        %702 = vmatprep.mubr.f32.mxu0 0.0
        %703 = vmatmul.mubr.f32.gmra.mxu0 %v636
        %v704 = vpop.f32.mrf.mxu0
        %v705 = vadd.f32 0.0, %v704
        %v706 = vpop.f32.mrf.mxu0
        %707 = vdwg.mxu0
        %v708 = vadd.f32 %v628, %v705
        %v709 = vld [vmem:[%s3] sm:$0x1]
        %v711 = vlaneseq
        %v712 = vshrl.u32 %v711, 7
        %v713 = vsub.s32 0, %v712
        %v714 = vrot.slane %v709, %v713
        %v716 = vadd.f32 %v708, %v714
        %v717 = vsub.f32 0.0, %v716
        %v718 = vmul.f32 %v717, 1.442695
        %v719 = vpow.pop %v718
        %v720 = vadd.f32 %v719, 1.0
        %v721 = vrcp.pop %v720
        %v722 = vmul.f32 1.0, %v721
        %723 = vst.msk [vmem:[%s292] sm:$0xff] %vm310, %v722
        %s724 = sand.u32 %s150, 1
        %s725 = scalar_lea.sflag [#allocation5], %s724
        %s726 = sand.u32 %s150, 1
        %s727 = smul.addr %s726, 8
        %s728 = scalar_lea.vmem [#allocation9], %s727
        // Predicated region
        $region57: #{tpu_custom_call.1} parent=35 // pred_check
          %p729 = pneg %p160
        $region58: #{tpu_custom_call.1} parent=35 // pred_check_branch
          %731 = sbr.rel (%p729) target = $region60
        $region59: #{tpu_custom_call.1} parent=35 // pred_region
          %s733 = ssub.s32 128, 128
          %734 = vsyncadd %s725, %s733
          %s735 = sadd.s32 %s29, %s28
          %s736 = smul.addr %s735, 128
          %s737 = scalar_lea.hbm %s4, %s736
          %s739 = sshll.u32 %s728, 4
          %s740 = int_to_ptr.vmem [resolvable:$true] %s739
          %742 = dma.vmem_to_hbm [thread:$0]  %s740, 128, %s737, %s725
        $region60: #{tpu_custom_call.1} parent=35 // pred_fallthru
          _
      $region36: #{tpu_custom_call.1} parent=5 // pred_fallthru
        _
      %p743 = scmp.le.s32.totalorder 2, %s19
      // Predicated region
      $region61: #{tpu_custom_call.1} parent=5 // pred_check
        %p744 = pneg %p743
      $region62: #{tpu_custom_call.1} parent=5 // pred_check_branch
        %746 = sbr.rel (%p744) target = $region64
      $region63: #{tpu_custom_call.1} parent=5 // pred_region
        %s747 = ssub.s32 %s19, 2
        // Predicated region
        $region65: #{tpu_custom_call.1} parent=63 // pred_check
          %p748 = pneg %p166
        $region66: #{tpu_custom_call.1} parent=63 // pred_check_branch
          %750 = sbr.rel (%p748) target = $region68
        $region67: #{tpu_custom_call.1} parent=63 // pred_region
          %s751 = sand.u32 %s151, 1
          %s752 = scalar_lea.sflag [#allocation5], %s751
          %s753 = sand.u32 %s151, 1
          %s754 = smul.addr %s753, 8
          %s755 = scalar_lea.vmem [#allocation9], %s754
          %756 = dma.done %s752, 128
        $region68: #{tpu_custom_call.1} parent=63 // pred_fallthru
          _
      $region64: #{tpu_custom_call.1} parent=5 // pred_fallthru
        _
    $region6: #{tpu_custom_call.1} parent=1 // loop_footer
      %s23 = sadd.s32 1, %s19
    $region7: #{tpu_custom_call.1} parent=1 // loop_footer_branch
      %18 = sbr.rel target = $region3
    $region8: #{tpu_custom_call.1} parent=1 // loop_exit
      _
    %757 = vsyncpa [#allocation4], 1
    %s758 = scalar_lea.sflag [#allocation4], 1
    %759 = vsyncpa %s758, 1
    %760 = vsyncpa [#allocation7], 1
    %s761 = scalar_lea.sflag [#allocation7], 1
    %762 = vsyncpa %s761, 1
    %763 = vsyncpa [#allocation5], 1
    %s764 = scalar_lea.sflag [#allocation5], 1
    %765 = vsyncpa %s764, 1

</llo_original>
